<compile_context>
chip_gen: v7x
topology: tpu7x:2x2x1
jax: 0.10.0
libtpu: 0.0.40
codegen_flags: <defaults>
</compile_context>

<pallas_src>
import functools

import jax
import jax.numpy as jnp
from jax.experimental import pallas as pl
from jax.experimental.pallas import tpu as pltpu

_LANE = 128
_SUBLANE = 8
_MiB = 1024 * 1024
# Inputs smaller than this go straight to XLA: pallas_call launch + pipeline
# prologue dominates and XLA fuses this pattern trivially at a few KiB.
_SMALL_FALLBACK_BYTES = 1 * _MiB


def _round_down_mult(x, m):
    return max(m, (x // m) * m)


@functools.lru_cache(maxsize=1)
def _chip_budget():
    """Returns (per-operand block-byte target, vmem_limit_bytes or None, cap).

    Per-step overhead is ~0.35 us; larger blocks amortize it, but the
    double-buffered in+out footprint (4x block) must stay inside each
    generation's scoped-VMEM budget (v5e 16 MiB default, v6e 32 MiB default,
    v7x 32 MiB default of 64 MiB physical -> raise the limit explicitly).
    """
    try:
        kind = jax.devices()[0].device_kind.lower()
    except Exception:  # pragma: no cover - defensive
        kind = ""
    if "v7" in kind:
        return 6 * _MiB, 48 * _MiB, 56 * _MiB
    if "v6" in kind:
        return 4 * _MiB, None, 100 * _MiB
    # v5e / v5p / v4 / unknown: conservative.
    return 2 * _MiB, None, 60 * _MiB


def _compiler_params(semantics, block_bytes):
    _, chip_limit, chip_cap = _chip_budget()
    # in + out, double-buffered, plus headroom for Mosaic internals.
    needed = 4 * block_bytes + 2 * _MiB
    limit = chip_limit
    if limit is None:
        if needed > 12 * _MiB:  # above the smallest (v5e) scoped default
            limit = needed
    elif needed > limit:
        limit = needed
    kwargs = dict(dimension_semantics=semantics)
    if limit is not None:
        kwargs["vmem_limit_bytes"] = int(min(limit, chip_cap))
    return pltpu.CompilerParams(**kwargs)


def _ensure_two_steps(n, bn, r, tr, r_align):
    """Shrink BN (or the trailing tile) so the parallel grid has >= 2 steps.

    v7x shards 'parallel' grid axes across its two TensorCores; a (1, 1) grid
    idles half the chip.  Costs at most one extra ~0.35 us step elsewhere.
    """
    if pl.cdiv(n, bn) * pl.cdiv(r, tr) >= 2:
        return bn, tr
    if n >= 2:
        return pl.cdiv(n, 2), tr
    if r >= 2 * r_align:
        return bn, _round_down_mult(pl.cdiv(r, 2), r_align)
    return bn, tr


def _normalize_kernel(x_ref, o_ref, *, power, eps):
    # The reduction axis is always block axis 1:
    #   2D block (TN, F)          -> reduce over lanes
    #   3D block (BN, C, TL)      -> reduce over sublanes (XLU)
    #   4D block (BN, C, TS, 128) -> reduce over a leading axis (VPU adds)
    x = x_ref[...]
    xf = x.astype(jnp.float32)

    if power == 2:
        s = jnp.sum(xf * xf, axis=1, keepdims=True)
        # eps guard: avoids 0 * rsqrt(0) = NaN for all-zero rows; no effect on
        # non-degenerate inputs.
        scale = jax.lax.rsqrt(jnp.maximum(s, eps))
    else:
        if isinstance(power, int) and power > 0:
            # Repeated multiplies stay on the 4-wide VPU (no per-element
            # exp/log on the single EUP).
            xp = xf
            for _ in range(int(power) - 1):
                xp = xp * xf
        else:
            xp = jnp.power(xf, power)
        s = jnp.sum(xp, axis=1, keepdims=True)
        if isinstance(power, int) and power > 0 and power % 2 == 0:
            s = jnp.maximum(s, eps)
        # One power per reduced position, then a multiply per element instead
        # of a divide per element.
        scale = jnp.power(s, -1.0 / power)

    # Multiply in f32, cast once at the store (HBM-bound on every generation;
    # v5e's VPU has no bf16 ALU so a bf16 multiply would be upcast anyway).
    o_ref[...] = (xf * scale).astype(o_ref.dtype)


def _normalize_jnp(x, power, eps):
    """Pure-XLA fallback with the same numerics as the kernel."""
    xf = x.astype(jnp.float32)
    if power == 2:
        s = jnp.sum(xf * xf, axis=1, keepdims=True)
        scale = jax.lax.rsqrt(jnp.maximum(s, eps))
    else:
        s = jnp.sum(jnp.power(xf, power), axis=1, keepdims=True)
        if isinstance(power, int) and power > 0 and power % 2 == 0:
            s = jnp.maximum(s, eps)
        scale = jnp.power(s, -1.0 / power)
    return (xf * scale).astype(x.dtype)


def _normalize_2d(x, power, eps):
    """Lane-dense path for (N, F) inputs with F >= 128 (reduce over lanes)."""
    N, F = x.shape
    itemsize = x.dtype.itemsize
    target, _, _ = _chip_budget()

    max_tn = max(_SUBLANE, target // max(1, F * itemsize))
    TN = N if N <= max_tn else _round_down_mult(max_tn, _SUBLANE)
    # Keep both TensorCores busy on v7x.
    if pl.cdiv(N, TN) < 2 and N >= 2 * _SUBLANE:
        TN = _round_down_mult(pl.cdiv(N, 2), _SUBLANE)

    block_bytes = TN * F * itemsize
    kernel = functools.partial(_normalize_kernel, power=power, eps=eps)
    return pl.pallas_call(
        kernel,
        out_shape=jax.ShapeDtypeStruct((N, F), x.dtype),
        grid_spec=pltpu.PrefetchScalarGridSpec(
            num_scalar_prefetch=0,
            grid=(pl.cdiv(N, TN),),
            in_specs=[pl.BlockSpec((TN, F), lambda n: (n, 0))],
            out_specs=pl.BlockSpec((TN, F), lambda n: (n, 0)),
        ),
        compiler_params=_compiler_params(("parallel",), block_bytes),
    )(x)


def _normalize_nd_3d(xr, power, eps):
    """(N, C, L) blocks; C (whole) on sublanes, L tiled on lanes."""
    N, C, L = xr.shape
    itemsize = xr.dtype.itemsize
    target, _, _ = _chip_budget()

    max_tl = max(_LANE, target // max(1, C * itemsize))
    TL = L if L <= max_tl else _round_down_mult(max_tl, _LANE)
    # BN packs batch elements only to amortize the ~0.35 us per-step overhead.
    BN = max(1, min(N, target // max(1, C * TL * itemsize)))
    BN, TL = _ensure_two_steps(N, BN, L, TL, _LANE)

    block_bytes = BN * C * TL * itemsize
    kernel = functools.partial(_normalize_kernel, power=power, eps=eps)
    return pl.pallas_call(
        kernel,
        out_shape=jax.ShapeDtypeStruct((N, C, L), xr.dtype),
        grid_spec=pltpu.PrefetchScalarGridSpec(
            num_scalar_prefetch=0,
            grid=(pl.cdiv(N, BN), pl.cdiv(L, TL)),
            in_specs=[pl.BlockSpec((BN, C, TL), lambda n, l: (n, 0, l))],
            out_specs=pl.BlockSpec((BN, C, TL), lambda n, l: (n, 0, l)),
        ),
        compiler_params=_compiler_params(("parallel", "parallel"), block_bytes),
    )(xr)


def _normalize_nd_4d(xr, power, eps):
    """C < 8 density path: (N, C, L) -> (N, C, S, 128).

    Every (TS, 128) vreg tile is fully dense, and the channel reduction is
    plain VPU adds across leading-axis tiles instead of a cross-sublane XLU
    reduce on a vreg that is 50-62% padding when C in {3, 4, 6}.
    """
    N, C, L = xr.shape
    S = L // _LANE
    x4 = xr.reshape(N, C, S, _LANE)  # contiguous reshape: no data movement
    itemsize = xr.dtype.itemsize
    target, _, _ = _chip_budget()

    max_ts = max(_SUBLANE, target // max(1, C * _LANE * itemsize))
    TS = S if S <= max_ts else _round_down_mult(max_ts, _SUBLANE)
    BN = max(1, min(N, target // max(1, C * TS * _LANE * itemsize)))
    BN, TS = _ensure_two_steps(N, BN, S, TS, _SUBLANE)

    block_bytes = BN * C * TS * _LANE * itemsize
    kernel = functools.partial(_normalize_kernel, power=power, eps=eps)
    out = pl.pallas_call(
        kernel,
        out_shape=jax.ShapeDtypeStruct((N, C, S, _LANE), xr.dtype),
        grid_spec=pltpu.PrefetchScalarGridSpec(
            num_scalar_prefetch=0,
            grid=(pl.cdiv(N, BN), pl.cdiv(S, TS)),
            in_specs=[pl.BlockSpec((BN, C, TS, _LANE),
                                   lambda n, s: (n, 0, s, 0))],
            out_specs=pl.BlockSpec((BN, C, TS, _LANE),
                                   lambda n, s: (n, 0, s, 0)),
        ),
        compiler_params=_compiler_params(("parallel", "parallel"), block_bytes),
    )(x4)
    return out.reshape(N, C, L)


def normalize(x, power=2, eps=1e-12, force_pallas=False):
    """Pallas port of ES/DEEN Normalize.forward (Lp-normalize over dim 1)."""
    if x.ndim < 2:
        raise ValueError("normalize expects >= 2 dims (reduces dim 1)")

    # Tiny inputs: pallas_call launch/pipeline prologue dominates and XLA
    # fuses this pattern trivially -- don't regress at the model's real sizes.
    if not force_pallas and x.size * x.dtype.itemsize < _SMALL_FALLBACK_BYTES:
        return _normalize_jnp(x, power, eps)

    if x.ndim == 2:
        N, F = x.shape
        if F < _LANE:
            # Lane-sparse reduction (F < 128): masked stores + up-to-4x lane
            # waste in the Pallas path; XLA handles it fine.
            # TODO(synk): lane-dense transposed (F, N) path for very large N.
            return _normalize_jnp(x, power, eps)
        return _normalize_2d(x, power, eps)

    orig_shape = x.shape
    xr = x.reshape(x.shape[0], x.shape[1], -1)  # (N, C, L = prod(spatial))
    N, C, L = xr.shape

    if C < _SUBLANE and L >= _LANE and L % _LANE == 0:
        out = _normalize_nd_4d(xr, power, eps)
    else:
        # Padding L to a 128-multiple for the dense 4D path would cost an
        # extra HBM pass; for this bandwidth-bound op the 3D path wins.
        out = _normalize_nd_3d(xr, power, eps)
    return out.reshape(orig_shape)


def _reference(x, power=2):
    xf = x.astype(jnp.float32)
    norm = jnp.power(jnp.sum(jnp.power(xf, power), axis=1, keepdims=True),
                     1.0 / power)
    return (xf / norm).astype(x.dtype)


if __name__ == "__main__":
    keys = jax.random.split(jax.random.PRNGKey(0), 8)

    def check(x, power, tol, **kw):
        out = normalize(x, power=power, **kw)
        jax.block_until_ready(out)
        ref = _reference(x, power=power)
        assert out.shape == x.shape and out.dtype == x.dtype
        assert jnp.allclose(out.astype(jnp.float32), ref.astype(jnp.float32),
                            atol=tol, rtol=tol), (x.shape, power)

    # NCHW conv-feature input, C<8 and L%128==0 -> dense 4D Pallas path.
    check(jax.random.normal(keys[0], (2, 4, 16, 16), jnp.float32), 2, 1e-5,
          force_pallas=True)
    # C >= 8 -> 3D Pallas path.
    check(jax.random.normal(keys[1], (2, 16, 16, 16), jnp.float32), 2, 1e-5,
          force_pallas=True)
    # Non-aligned dims (C not a multiple of 8, spatial not a multiple of 128).
    check(jax.random.normal(keys[2], (3, 6, 10, 10), jnp.float32), 2, 1e-5,
          force_pallas=True)
    # 2D feature input with lane-dense F -> 2D Pallas path.
    check(jax.random.normal(keys[3], (16, 256), jnp.float32), 2, 1e-5,
          force_pallas=True)
    # General (non-2) integer power.
    check(jax.random.normal(keys[4], (2, 4, 8, 8), jnp.float32), 4, 1e-5,
          force_pallas=True)
    # bf16 input (dtype-aware block sizing; f32 accumulate, bf16 store).
    check(jax.random.normal(keys[5], (2, 4, 16, 16), jnp.float32)
          .astype(jnp.bfloat16), 2, 2e-2, force_pallas=True)
    # Tiny-input XLA fallback path (default threshold).
    check(jax.random.normal(keys[6], (2, 32), jnp.float32), 2, 1e-5)

    print("KERNEL_OK")
</pallas_src>

<mosaic_0001>
module attributes {stable_mosaic.version = 11 : i64} {
  func.func @_normalize_kernel(%arg0: i32, %arg1: i32, %arg2: memref<1x4x2x128xf32, #tpu.memory_space<vmem>>, %arg3: memref<1x4x2x128xf32, #tpu.memory_space<vmem>>) attributes {dimension_semantics = [#tpu.dimension_semantics<parallel>, #tpu.dimension_semantics<parallel>], iteration_bounds = array<i64: 2, 1>, scalar_prefetch = 0 : i64, scratch_operands = 0 : i64, tpu.core_type = #tpu.core_type<tc>, window_params = [{transform_indices = @transform_0, window_bounds = array<i64: 1, 4, 2, 128>}, {transform_indices = @transform_1, window_bounds = array<i64: 1, 4, 2, 128>}]} {
    %c0 = arith.constant 0 : index
    %c0_0 = arith.constant 0 : index
    %c0_1 = arith.constant 0 : index
    %c0_2 = arith.constant 0 : index
    %0 = vector.load %arg2[%c0, %c0_0, %c0_1, %c0_2] : memref<1x4x2x128xf32, #tpu.memory_space<vmem>>, vector<1x4x2x128xf32>
    %1 = arith.mulf %0, %0 : vector<1x4x2x128xf32>
    %cst = arith.constant dense<0.000000e+00> : vector<1x2x128xf32>
    %2 = vector.multi_reduction <add>, %1, %cst [1] : vector<1x4x2x128xf32> to vector<1x2x128xf32>
    %3 = vector.shape_cast %2 : vector<1x2x128xf32> to vector<1x1x2x128xf32>
    %cst_3 = arith.constant 9.99999996E-13 : f32
    %4 = vector.broadcast %cst_3 : f32 to vector<1x1x2x128xf32>
    %5 = arith.maximumf %3, %4 : vector<1x1x2x128xf32>
    %6 = math.rsqrt %5 : vector<1x1x2x128xf32>
    %7 = vector.broadcast %6 : vector<1x1x2x128xf32> to vector<1x4x2x128xf32>
    %8 = arith.mulf %0, %7 : vector<1x4x2x128xf32>
    %c0_4 = arith.constant 0 : index
    %c0_5 = arith.constant 0 : index
    %c0_6 = arith.constant 0 : index
    %c0_7 = arith.constant 0 : index
    %9 = vector.load %arg3[%c0_4, %c0_5, %c0_6, %c0_7] : memref<1x4x2x128xf32, #tpu.memory_space<vmem>>, vector<1x4x2x128xf32>
    tpu.vector_store %arg3[%c0_4, %c0_5, %c0_6, %c0_7], %8 {strides = array<i32>} : memref<1x4x2x128xf32, #tpu.memory_space<vmem>>, vector<1x4x2x128xf32>,
    return
  }
  func.func @transform_0(%arg0: i32, %arg1: i32) -> (i32, i32, i32, i32) {
    %c0_i32 = arith.constant 0 : i32
    %c0_i32_0 = arith.constant 0 : i32
    %c0_i32_1 = arith.constant 0 : i32
    return %arg0, %c0_i32, %arg1, %c0_i32_0 : i32, i32, i32, i32
  }
  func.func @transform_1(%arg0: i32, %arg1: i32) -> (i32, i32, i32, i32) {
    %c0_i32 = arith.constant 0 : i32
    %c0_i32_0 = arith.constant 0 : i32
    %c0_i32_1 = arith.constant 0 : i32
    return %arg0, %c0_i32, %arg1, %c0_i32_0 : i32, i32, i32, i32
  }
}

</mosaic_0001>

<llo_original>
// kernel: tpu_custom_call.1
$region0: #{tpu_custom_call.1}
  #allocation0 [shape = 'u32[]', space=smem, size = 0x4, offset = 0x4, fixed_abs, tag = 'smem constant byte address 0x4 - core index']
  #allocation1 [shape = 'u32[144,128]{1,0:T(1,128)}', space=vmem, size = 0x12000, scoped, tag = 'internal scratch']
  %s0 = inlined_call_operand.hbm [shape: f32[2,4,2,128], index: 0, kind: input, shape index: {}]
  %s1 = inlined_call_operand.hbm [shape: f32[2,4,2,128], index: 1, kind: output, shape index: {}]
  %s2 = sld [smem:[#allocation0]]
  $region41: #{tpu_custom_call.1} parent=0
    _
  %s4 = ssub.s32 1, %s2
  %s5 = scalar_select 0, %s4, %s2
  $region1: #{tpu_custom_call.1} parent=0
    #allocation2 [shape = 'u8[8192]{0}', space=vmem, size = 0x2000, scoped, tag = 'input window, operand 0']
    #allocation3 [shape = 's32[2]{0}', space=sflag, size = 0x8, scoped, tag = 'scoped memory for tpu_custom_call.1']
    #allocation4 [shape = 's32[2]{0}', space=sflag, size = 0x8, scoped, tag = 'scoped memory for tpu_custom_call.1']
    #allocation5 [shape = 'u8[8192]{0}', space=vmem, size = 0x2000, scoped, tag = 'output window, operand 0']
    %6 = vsyncpa [#allocation3], 0
    %s7 = scalar_lea.sflag [#allocation3], 1
    %8 = vsyncpa %s7, 0
    %9 = vsyncpa [#allocation4], 0
    %s10 = scalar_lea.sflag [#allocation4], 1
    %11 = vsyncpa %s10, 0
    loop: start=0, step=1, limit=4
    $region2: #{tpu_custom_call.1} parent=1 // loop_pre_header
      _
    $region3: #{tpu_custom_call.1} parent=1 // loop_header
      %s13 = sphi 0, %s17
      %p14 = scmp.ge.s32.totalorder %s13, 4
      %s20 = sphi 0, %s32
      %s21 = sphi 0, %s28
      %s22 = sphi 0, %s20
      %s23 = sphi 0, %s21
      %s24 = sphi 0, %s22
      %s25 = sphi 0, %s23
      %s37 = sphi 0, %s39
      %s40 = sphi 0, %s37
      %s41 = sphi 0, %s40
      %s57 = sphi 0, %s41
      %s65 = sphi 0, %s67
      %s68 = sphi 0, %s65
      %s69 = sphi 0, %s68
      %s85 = sphi 0, %s69
    $region4: #{tpu_custom_call.1} parent=1 // loop_header_branch
      %16 = sbr.rel (%p14) target = $region8
    $region5: #{tpu_custom_call.1} parent=1 // loop_body
      %s18 = ssub.s32 %s13, 1
      %s19 = ssub.s32 %s13, 2
      %s26 = sadd.s32 1, %s21
      %p27 = scmp.ge.s32.totalorder %s26, 1
      %s28 = scalar_select %p27, 0, %s26
      %s29 = sadd.s32 1, %s20
      %s30 = scalar_select %p27, %s29, %s20
      %p31 = scmp.ge.s32.totalorder %s30, 2
      %s32 = scalar_select %p31, 0, %s30
      %s33 = ssub.s32 %s20, %s32
      %s34 = ssub.s32 %s21, %s28
      %s35 = sor.u32 %s33, %s34
      %p36 = scmp.eq.s32.totalorder %s35, 0
      %s38 = sadd.s32 %s37, 1
      %s39 = scalar_select %p36, %s37, %s38
      %p42 = pneg %p36
      %p43 = scmp.eq.s32.totalorder %s13, 1
      %p44 = por %p42, %p43
      %p45 = scmp.ne.s32.totalorder %s37, %s40
      %p46 = scmp.eq.s32.totalorder %s13, 0
      %p47 = por %p45, %p46
      %p48 = scmp.ne.s32.totalorder %s37, %s40
      %p49 = scmp.eq.s32.totalorder %s18, 1
      %p50 = por %p48, %p49
      %p51 = scmp.ne.s32.totalorder %s40, %s41
      %p52 = scmp.eq.s32.totalorder %s18, 0
      %p53 = por %p51, %p52
      %p54 = scmp.ne.s32.totalorder %s40, %s41
      %p55 = scmp.eq.s32.totalorder %s19, 1
      %p56 = por %p54, %p55
      %p58 = scmp.ne.s32.totalorder %s41, %s57
      %p59 = scmp.eq.s32.totalorder %s19, 0
      %p60 = por %p58, %p59
      %s61 = ssub.s32 %s20, %s32
      %s62 = ssub.s32 %s21, %s28
      %s63 = sor.u32 %s61, %s62
      %p64 = scmp.eq.s32.totalorder %s63, 0
      %s66 = sadd.s32 %s65, 1
      %s67 = scalar_select %p64, %s65, %s66
      %p70 = pneg %p64
      %p71 = scmp.eq.s32.totalorder %s13, 1
      %p72 = por %p70, %p71
      %p73 = scmp.ne.s32.totalorder %s65, %s68
      %p74 = scmp.eq.s32.totalorder %s13, 0
      %p75 = por %p73, %p74
      %p76 = scmp.ne.s32.totalorder %s65, %s68
      %p77 = scmp.eq.s32.totalorder %s18, 1
      %p78 = por %p76, %p77
      %p79 = scmp.ne.s32.totalorder %s68, %s69
      %p80 = scmp.eq.s32.totalorder %s18, 0
      %p81 = por %p79, %p80
      %p82 = scmp.ne.s32.totalorder %s68, %s69
      %p83 = scmp.eq.s32.totalorder %s19, 1
      %p84 = por %p82, %p83
      %p86 = scmp.ne.s32.totalorder %s69, %s85
      %p87 = scmp.eq.s32.totalorder %s19, 0
      %p88 = por %p86, %p87
      %p89 = scmp.le.s32.totalorder 1, %s13
      %p90 = scmp.lt.s32.totalorder %s13, 3
      %p91 = pnand %p89, %p90
      %p92 = pneg %p91
      // Predicated region
      $region9: #{tpu_custom_call.1} parent=5 // pred_check
        _
      $region10: #{tpu_custom_call.1} parent=5 // pred_check_branch
        %94 = sbr.rel (%p91) target = $region12
      $region11: #{tpu_custom_call.1} parent=5 // pred_region
        %s95 = ssub.s32 %s13, 1
      $region12: #{tpu_custom_call.1} parent=5 // pred_fallthru
        _
      %p96 = scmp.lt.s32.totalorder %s13, 2
      // Predicated region
      $region13: #{tpu_custom_call.1} parent=5 // pred_check
        %p97 = pneg %p96
      $region14: #{tpu_custom_call.1} parent=5 // pred_check_branch
        %99 = sbr.rel (%p97) target = $region16
      $region15: #{tpu_custom_call.1} parent=5 // pred_region
        // Predicated region
        $region17: #{tpu_custom_call.1} parent=15 // pred_check
          %p100 = pneg %p47
        $region18: #{tpu_custom_call.1} parent=15 // pred_check_branch
          %102 = sbr.rel (%p100) target = $region20
        $region19: #{tpu_custom_call.1} parent=15 // pred_region
          %s103 = sand.u32 %s37, 1
          %s104 = scalar_lea.sflag [#allocation3], %s103
          %s105 = sand.u32 %s37, 1
          %s106 = smul.addr %s105, 8
          %s107 = scalar_lea.vmem [#allocation2], %s106
          %s109 = ssub.s32 128, 128
          %110 = vsyncadd %s104, %s109
          %s111 = smul.addr %s20, 4
          %s112 = sadd.s32 %s21, %s111
          %s113 = smul.addr %s112, 32
          %s114 = scalar_lea.hbm %s0, %s113
          %s115 = sshll.u32 %s107, 4
          %s116 = int_to_ptr.vmem [resolvable:$true] %s115
          %121 = dma.hbm_to_vmem [thread:$0]  %s114, 128, %s116, %s104, 32, 32, 2
        $region20: #{tpu_custom_call.1} parent=15 // pred_fallthru
          _
      $region16: #{tpu_custom_call.1} parent=5 // pred_fallthru
        _
      %p122 = scmp.le.s32.totalorder 1, %s13
      %p123 = scmp.lt.s32.totalorder %s13, 3
      %p124 = pnand %p122, %p123
      %p125 = pneg %p124
      // Predicated region
      $region21: #{tpu_custom_call.1} parent=5 // pred_check
        _
      $region22: #{tpu_custom_call.1} parent=5 // pred_check_branch
        %127 = sbr.rel (%p124) target = $region24
      $region23: #{tpu_custom_call.1} parent=5 // pred_region
        %s128 = ssub.s32 %s13, 1
        %s129 = sand.u32 %s40, 1
        %s130 = scalar_lea.sflag [#allocation3], %s129
        %s131 = sand.u32 %s40, 1
        %s132 = smul.addr %s131, 8
        %s133 = scalar_lea.vmem [#allocation2], %s132
        // Predicated region
        $region25: #{tpu_custom_call.1} parent=23 // pred_check
          %p134 = pneg %p53
        $region26: #{tpu_custom_call.1} parent=23 // pred_check_branch
          %136 = sbr.rel (%p134) target = $region28
        $region27: #{tpu_custom_call.1} parent=23 // pred_region
          %137 = dma.done %s130, 128
        $region28: #{tpu_custom_call.1} parent=23 // pred_fallthru
          _
        %s138 = sand.u32 %s40, 1
        %s139 = scalar_lea.sflag [#allocation3], %s138
        %s140 = sand.u32 %s40, 1
        %s141 = smul.addr %s140, 8
        %s142 = scalar_lea.vmem [#allocation2], %s141
        %p143 = pneg %p53
        %p144 = pneg %p50
        %p145 = pneg %p81
        %p146 = pneg %p78
        %s147 = sand.u32 %s68, 1
        %s148 = scalar_lea.sflag [#allocation4], %s147
        %s149 = sand.u32 %s68, 1
        %s150 = smul.addr %s149, 8
        %s151 = scalar_lea.vmem [#allocation5], %s150
        %v152 = vld [vmem:[%s133] sm:$0x3]
        %v153 = vld [vmem:[%s133 + $0x2] sm:$0x3]
        %v154 = vld [vmem:[%s133 + $0x4] sm:$0x3]
        %v155 = vld [vmem:[%s133 + $0x6] sm:$0x3]
        %v156 = vmul.f32 %v152, %v152
        %v157 = vmul.f32 %v153, %v153
        %v158 = vmul.f32 %v154, %v154
        %v159 = vmul.f32 %v155, %v155
        %vm160 = vcmask 1041408
        %v161 = vsel %vm160, %v156, 0.0
        %v162 = vsel %vm160, %v157, 0.0
        %v163 = vadd.f32 %v161, %v162
        %v164 = vsel %vm160, %v158, 0.0
        %v165 = vadd.f32 %v163, %v164
        %v166 = vsel %vm160, %v159, 0.0
        %v167 = vadd.f32 %v165, %v166
        %v168 = vmax.f32 %v167, 1e-12
        %v169 = vrsqrt.pop %v168
        %v170 = vmul.f32 %v152, %v169
        %v171 = vmul.f32 %v153, %v169
        %v172 = vmul.f32 %v154, %v169
        %v173 = vmul.f32 %v155, %v169
        %174 = vst [vmem:[%s151] sm:$0x3] %v170
        %175 = vst [vmem:[%s151 + $0x2] sm:$0x3] %v171
        %176 = vst [vmem:[%s151 + $0x4] sm:$0x3] %v172
        %177 = vst [vmem:[%s151 + $0x6] sm:$0x3] %v173
        %s178 = sand.u32 %s68, 1
        %s179 = scalar_lea.sflag [#allocation4], %s178
        %s180 = sand.u32 %s68, 1
        %s181 = smul.addr %s180, 8
        %s182 = scalar_lea.vmem [#allocation5], %s181
        // Predicated region
        $region29: #{tpu_custom_call.1} parent=23 // pred_check
          %p183 = pneg %p78
        $region30: #{tpu_custom_call.1} parent=23 // pred_check_branch
          %185 = sbr.rel (%p183) target = $region32
        $region31: #{tpu_custom_call.1} parent=23 // pred_region
          %s187 = ssub.s32 128, 128
          %188 = vsyncadd %s179, %s187
          %s189 = smul.addr %s22, 4
          %s190 = sadd.s32 %s23, %s189
          %s191 = smul.addr %s190, 32
          %s192 = scalar_lea.hbm %s1, %s191
          %s193 = sshll.u32 %s182, 4
          %s194 = int_to_ptr.vmem [resolvable:$true] %s193
          %199 = dma.vmem_to_hbm [thread:$0]  %s194, 128, %s192, %s179, 32, 32, 2
        $region32: #{tpu_custom_call.1} parent=23 // pred_fallthru
          _
      $region24: #{tpu_custom_call.1} parent=5 // pred_fallthru
        _
      %p200 = scmp.le.s32.totalorder 2, %s13
      // Predicated region
      $region33: #{tpu_custom_call.1} parent=5 // pred_check
        %p201 = pneg %p200
      $region34: #{tpu_custom_call.1} parent=5 // pred_check_branch
        %203 = sbr.rel (%p201) target = $region36
      $region35: #{tpu_custom_call.1} parent=5 // pred_region
        %s204 = ssub.s32 %s13, 2
        // Predicated region
        $region37: #{tpu_custom_call.1} parent=35 // pred_check
          %p205 = pneg %p84
        $region38: #{tpu_custom_call.1} parent=35 // pred_check_branch
          %207 = sbr.rel (%p205) target = $region40
        $region39: #{tpu_custom_call.1} parent=35 // pred_region
          %s208 = sand.u32 %s69, 1
          %s209 = scalar_lea.sflag [#allocation4], %s208
          %s210 = sand.u32 %s69, 1
          %s211 = smul.addr %s210, 8
          %s212 = scalar_lea.vmem [#allocation5], %s211
          %213 = dma.done %s209, 128
        $region40: #{tpu_custom_call.1} parent=35 // pred_fallthru
          _
      $region36: #{tpu_custom_call.1} parent=5 // pred_fallthru
        _
    $region6: #{tpu_custom_call.1} parent=1 // loop_footer
      %s17 = sadd.s32 1, %s13
    $region7: #{tpu_custom_call.1} parent=1 // loop_footer_branch
      %12 = sbr.rel target = $region3
    $region8: #{tpu_custom_call.1} parent=1 // loop_exit
      _
    %214 = vsyncpa [#allocation3], 1
    %s215 = scalar_lea.sflag [#allocation3], 1
    %216 = vsyncpa %s215, 1
    %217 = vsyncpa [#allocation4], 1
    %s218 = scalar_lea.sflag [#allocation4], 1
    %219 = vsyncpa %s218, 1

</llo_original>
